<compile_context>
chip_gen: v6e
topology: v6e:2x2x1
jax: 0.10.0
libtpu: 0.0.40
codegen_flags: <defaults>
</compile_context>

<pallas_src>
import functools

import jax
import jax.numpy as jnp
from jax.experimental import pallas as pl
from jax.experimental.pallas import tpu as pltpu


LANE = 128      # lane width (last dim)
SUBLANE = 8     # f32 sublane count (second-to-last dim)


def _ceil_to(x, m):
    return (x + m - 1) // m * m


def _pad_to(a, shape):
    return jnp.pad(a, [(0, t - s) for s, t in zip(a.shape, shape)])


# ----------------------------------------------------------------------------
# Pallas kernel: fused embedding gather + RNN recurrence + MLP decoder.
# ----------------------------------------------------------------------------
def rnn_decoder_kernel(tok_ref,      # VMEM (S*Bp, 1) int32, time-major tokens
                       emb_ref,      # VMEM (Vp, Ep)     embedding table
                       w_ih_ref,     # VMEM (Ep, Hp)
                       w_hh_ref,     # VMEM (Hp, Hp)
                       b_ref,        # VMEM (1, Hp)      combined b_ih + b_hh
                       w1_ref,       # VMEM (Hp, Fp)     decoder layer 1
                       b1_ref,       # VMEM (1, Fp)
                       w2_ref,       # VMEM (1, Fp)      decoder layer 2 (row)
                       b2_ref,       # VMEM (1, 1)
                       out_ref,      # VMEM (Bp, 128)    lane-dense output
                       *, seq_len, batch_pad):
    rows = seq_len * batch_pad
    vocab_pad = emb_ref.shape[0]

    # --- fused embedding gather (embedder + transpose(0,1)) as one-hot matmul
    tok = tok_ref[...]                                           # (rows, 1)
    vid = jax.lax.broadcasted_iota(jnp.int32, (rows, vocab_pad), 1)
    onehot = (vid == tok).astype(jnp.float32)                    # (rows, Vp)
    x = jnp.dot(onehot, emb_ref[...],
                preferred_element_type=jnp.float32)              # (rows, Ep)

    # --- input projection hoisted out of the serial recurrence ---------------
    x_proj = (jnp.dot(x, w_ih_ref[...],
                      preferred_element_type=jnp.float32)
              + b_ref[...])                                      # (rows, Hp)

    # --- tanh recurrence, statically unrolled over time ----------------------
    w_hh = w_hh_ref[...]
    h = jnp.zeros((batch_pad, w_hh.shape[0]), jnp.float32)
    for t in range(seq_len):
        pre = (x_proj[t * batch_pad:(t + 1) * batch_pad, :]
               + jnp.dot(h, w_hh, preferred_element_type=jnp.float32))
        h = jnp.tanh(pre)                             # == torch h[-1] at t=S-1

    # --- decoder: Linear(H,150) -> ReLU -> Linear(150,1) ---------------------
    z = jnp.maximum(jnp.dot(h, w1_ref[...],
                            preferred_element_type=jnp.float32) + b1_ref[...],
                    0.0)                                         # (Bp, Fp)
    # second GEMV as VPU mul + lane reduce (XLU) instead of a 1-wide MXU dot
    s = jnp.sum(z * w2_ref[...], axis=-1, keepdims=True) + b2_ref[...]  # (Bp,1)
    out_ref[...] = jnp.broadcast_to(s, out_ref.shape)  # lane-dense (Bp, 128)


# ----------------------------------------------------------------------------
# Wrapper: pad to hardware tiles, plumb pallas_call, slice real batch back out.
# ----------------------------------------------------------------------------
@jax.jit
def recurrent_model_forward(tokens, params):
    """tokens: (B, S) int32. Returns (B,) float32 (matches torch .view(-1))."""
    B, S = tokens.shape
    V, E = params["emb"].shape
    H = params["w_hh"].shape[0]
    F = params["dec_w1"].shape[1]

    Vp = _ceil_to(V, LANE)
    Ep = _ceil_to(E, LANE)
    Hp = _ceil_to(H, LANE)
    Fp = _ceil_to(F, LANE)
    Bp = max(_ceil_to(B, SUBLANE), SUBLANE)

    # zero-pad operands to (8,128)-aligned tiles (padding is numerically inert;
    # padded batch rows are row-independent through the recurrence and sliced
    # off at the end)
    emb  = _pad_to(params["emb"].astype(jnp.float32), (Vp, Ep))
    w_ih = _pad_to(params["w_ih"], (Ep, Hp))
    w_hh = _pad_to(params["w_hh"], (Hp, Hp))
    bias = _pad_to(params["b_ih"] + params["b_hh"], (1, Hp))
    w1   = _pad_to(params["dec_w1"], (Hp, Fp))
    b1   = _pad_to(params["dec_b1"], (1, Fp))
    w2   = _pad_to(params["dec_w2"].T, (1, Fp))       # (150,1) -> row (1,Fp)
    b2   = params["dec_b2"]                           # (1, 1)

    # time-major, batch-padded token ids (tiny: B*S int32)
    tok_tm = _pad_to(jnp.transpose(tokens, (1, 0)).astype(jnp.int32), (S, Bp))
    tok_tm = tok_tm.reshape(S * Bp, 1)

    kern = functools.partial(rnn_decoder_kernel, seq_len=S, batch_pad=Bp)

    vmem = pl.BlockSpec(memory_space=pltpu.MemorySpace.VMEM)

    out = pl.pallas_call(
        kern,
        out_shape=jax.ShapeDtypeStruct((Bp, LANE), jnp.float32),
        in_specs=[vmem] * 9,
        out_specs=vmem,
    )(tok_tm, emb, w_ih, w_hh, bias, w1, b1, w2, b2)

    return out[:B, 0]                                 # (B,)


# ----------------------------------------------------------------------------
# Pure-JAX reference (mirrors the torch forward) for a correctness check.
# ----------------------------------------------------------------------------
def reference_forward(tokens, params):
    dot = functools.partial(jnp.dot, precision=jax.lax.Precision.HIGHEST)
    x = params["emb"][tokens].astype(jnp.float32)     # (B, S, E)
    x = jnp.transpose(x, (1, 0, 2))                   # (S, B, E) time-major
    B = tokens.shape[0]
    H = params["w_hh"].shape[0]
    bias = params["b_ih"] + params["b_hh"]
    h = jnp.zeros((B, H), jnp.float32)
    for t in range(x.shape[0]):
        h = jnp.tanh(dot(x[t], params["w_ih"]) + dot(h, params["w_hh"]) + bias)
    z = jnp.maximum(dot(h, params["dec_w1"]) + params["dec_b1"], 0.0)
    return (dot(z, params["dec_w2"]) + params["dec_b2"]).reshape(-1)


# ----------------------------------------------------------------------------
# Deterministic parameter construction (shapes from the module's __init__).
# ----------------------------------------------------------------------------
def make_params(key, vocab_size, input_size, hidden_size, fc_hidden=150):
    ks = jax.random.split(key, 9)
    s_rnn = 1.0 / jnp.sqrt(hidden_size)
    s_fc1 = 1.0 / jnp.sqrt(hidden_size)
    s_fc2 = 1.0 / jnp.sqrt(fc_hidden)
    return {
        # nn.Embedding(vocab, input_size)
        "emb":    jax.random.normal(ks[0], (vocab_size, input_size), jnp.float32),
        # nn.RNN weights, pre-transposed to right-multiply form
        "w_ih":   jax.random.uniform(ks[1], (input_size, hidden_size), jnp.float32,
                                     -s_rnn, s_rnn),
        "w_hh":   jax.random.uniform(ks[2], (hidden_size, hidden_size), jnp.float32,
                                     -s_rnn, s_rnn),
        "b_ih":   jax.random.uniform(ks[3], (1, hidden_size), jnp.float32,
                                     -s_rnn, s_rnn),
        "b_hh":   jax.random.uniform(ks[4], (1, hidden_size), jnp.float32,
                                     -s_rnn, s_rnn),
        # decoder: Linear(H,150) -> ReLU -> Linear(150,1), pre-transposed
        "dec_w1": jax.random.uniform(ks[5], (hidden_size, fc_hidden), jnp.float32,
                                     -s_fc1, s_fc1),
        "dec_b1": jax.random.uniform(ks[6], (1, fc_hidden), jnp.float32,
                                     -s_fc1, s_fc1),
        "dec_w2": jax.random.uniform(ks[7], (fc_hidden, 1), jnp.float32,
                                     -s_fc2, s_fc2),
        "dec_b2": jax.random.uniform(ks[8], (1, 1), jnp.float32,
                                     -s_fc2, s_fc2),
    }


if __name__ == "__main__":
    key = jax.random.PRNGKey(0)
    k_tok, k_par = jax.random.split(key)

    # small shapes consistent with the module: batch=2, seq=8, hidden=32
    BATCH, SEQ = 2, 8
    VOCAB, INPUT_SIZE, HIDDEN = 50, 32, 32

    tokens = jax.random.randint(k_tok, (BATCH, SEQ), 0, VOCAB, dtype=jnp.int32)
    params = make_params(k_par, VOCAB, INPUT_SIZE, HIDDEN)

    out = recurrent_model_forward(tokens, params)
    out = jax.block_until_ready(out)
    assert out.shape == (BATCH,)

    ref = reference_forward(tokens, params)
    assert jnp.allclose(out, ref, atol=2e-2, rtol=2e-2), (out, ref)

    # TODO(synk): LSTM / GRU / bidirectional / has_attention / dropout branches
    # (not exercised by the default 'RNN', 1-layer config) are not implemented.
    print("KERNEL_OK")
</pallas_src>

<mosaic_0001>
module attributes {stable_mosaic.version = 11 : i64} {
  func.func @rnn_decoder_kernel(%arg0: memref<64x1xi32, #tpu.memory_space<vmem>>, %arg1: memref<128x128xf32, #tpu.memory_space<vmem>>, %arg2: memref<128x128xf32, #tpu.memory_space<vmem>>, %arg3: memref<128x128xf32, #tpu.memory_space<vmem>>, %arg4: memref<1x128xf32, #tpu.memory_space<vmem>>, %arg5: memref<128x256xf32, #tpu.memory_space<vmem>>, %arg6: memref<1x256xf32, #tpu.memory_space<vmem>>, %arg7: memref<1x256xf32, #tpu.memory_space<vmem>>, %arg8: memref<1x1xf32, #tpu.memory_space<vmem>>, %arg9: memref<8x128xf32, #tpu.memory_space<vmem>>) attributes {dimension_semantics = [], scalar_prefetch = 0 : i64, scratch_operands = 0 : i64, tpu.core_type = #tpu.core_type<tc>} {
    %c0 = arith.constant 0 : index
    %c0_0 = arith.constant 0 : index
    %0 = vector.load %arg0[%c0, %c0_0] : memref<64x1xi32, #tpu.memory_space<vmem>>, vector<64x1xi32>
    %1 = tpu.iota {dimensions = array<i32: 1>} : vector<64x128xi32>
    %2 = vector.broadcast %0 : vector<64x1xi32> to vector<64x128xi32>
    %3 = arith.cmpi eq, %1, %2 : vector<64x128xi32>
    %4 = arith.extui %3 : vector<64x128xi1> to vector<64x128xi32>
    %5 = arith.sitofp %4 : vector<64x128xi32> to vector<64x128xf32>
    %c0_1 = arith.constant 0 : index
    %c0_2 = arith.constant 0 : index
    %6 = vector.load %arg1[%c0_1, %c0_2] : memref<128x128xf32, #tpu.memory_space<vmem>>, vector<128x128xf32>
    %cst = arith.constant dense<0.000000e+00> : vector<64x128xf32>
    %7 = tpu.matmul %5, %6, %cst {dimension_numbers = #tpu.dot_dimension_numbers<[1], [0], [0], [1], [0, 0, 1, 1], [], []>} : vector<64x128xf32>, vector<128x128xf32>, vector<64x128xf32> -> vector<64x128xf32>
    %c0_3 = arith.constant 0 : index
    %c0_4 = arith.constant 0 : index
    %8 = vector.load %arg2[%c0_3, %c0_4] : memref<128x128xf32, #tpu.memory_space<vmem>>, vector<128x128xf32>
    %cst_5 = arith.constant dense<0.000000e+00> : vector<64x128xf32>
    %9 = tpu.matmul %7, %8, %cst_5 {dimension_numbers = #tpu.dot_dimension_numbers<[1], [0], [0], [1], [0, 0, 1, 1], [], []>} : vector<64x128xf32>, vector<128x128xf32>, vector<64x128xf32> -> vector<64x128xf32>
    %c0_6 = arith.constant 0 : index
    %c0_7 = arith.constant 0 : index
    %10 = vector.load %arg4[%c0_6, %c0_7] : memref<1x128xf32, #tpu.memory_space<vmem>>, vector<1x128xf32>
    %11 = vector.broadcast %10 : vector<1x128xf32> to vector<64x128xf32>
    %12 = arith.addf %9, %11 : vector<64x128xf32>
    %c0_8 = arith.constant 0 : index
    %c0_9 = arith.constant 0 : index
    %13 = vector.load %arg3[%c0_8, %c0_9] : memref<128x128xf32, #tpu.memory_space<vmem>>, vector<128x128xf32>
    %cst_10 = arith.constant 0.000000e+00 : f32
    %14 = vector.broadcast %cst_10 : f32 to vector<8x128xf32>
    %15 = vector.extract_strided_slice %12 {offsets = [0, 0], sizes = [8, 128], strides = [1, 1]} : vector<64x128xf32> to vector<8x128xf32>
    %cst_11 = arith.constant dense<0.000000e+00> : vector<8x128xf32>
    %16 = tpu.matmul %14, %13, %cst_11 {dimension_numbers = #tpu.dot_dimension_numbers<[1], [0], [0], [1], [0, 0, 1, 1], [], []>} : vector<8x128xf32>, vector<128x128xf32>, vector<8x128xf32> -> vector<8x128xf32>
    %17 = arith.addf %15, %16 : vector<8x128xf32>
    %18 = math.tanh %17 : vector<8x128xf32>
    %19 = vector.extract_strided_slice %12 {offsets = [8, 0], sizes = [8, 128], strides = [1, 1]} : vector<64x128xf32> to vector<8x128xf32>
    %cst_12 = arith.constant dense<0.000000e+00> : vector<8x128xf32>
    %20 = tpu.matmul %18, %13, %cst_12 {dimension_numbers = #tpu.dot_dimension_numbers<[1], [0], [0], [1], [0, 0, 1, 1], [], []>} : vector<8x128xf32>, vector<128x128xf32>, vector<8x128xf32> -> vector<8x128xf32>
    %21 = arith.addf %19, %20 : vector<8x128xf32>
    %22 = math.tanh %21 : vector<8x128xf32>
    %23 = vector.extract_strided_slice %12 {offsets = [16, 0], sizes = [8, 128], strides = [1, 1]} : vector<64x128xf32> to vector<8x128xf32>
    %cst_13 = arith.constant dense<0.000000e+00> : vector<8x128xf32>
    %24 = tpu.matmul %22, %13, %cst_13 {dimension_numbers = #tpu.dot_dimension_numbers<[1], [0], [0], [1], [0, 0, 1, 1], [], []>} : vector<8x128xf32>, vector<128x128xf32>, vector<8x128xf32> -> vector<8x128xf32>
    %25 = arith.addf %23, %24 : vector<8x128xf32>
    %26 = math.tanh %25 : vector<8x128xf32>
    %27 = vector.extract_strided_slice %12 {offsets = [24, 0], sizes = [8, 128], strides = [1, 1]} : vector<64x128xf32> to vector<8x128xf32>
    %cst_14 = arith.constant dense<0.000000e+00> : vector<8x128xf32>
    %28 = tpu.matmul %26, %13, %cst_14 {dimension_numbers = #tpu.dot_dimension_numbers<[1], [0], [0], [1], [0, 0, 1, 1], [], []>} : vector<8x128xf32>, vector<128x128xf32>, vector<8x128xf32> -> vector<8x128xf32>
    %29 = arith.addf %27, %28 : vector<8x128xf32>
    %30 = math.tanh %29 : vector<8x128xf32>
    %31 = vector.extract_strided_slice %12 {offsets = [32, 0], sizes = [8, 128], strides = [1, 1]} : vector<64x128xf32> to vector<8x128xf32>
    %cst_15 = arith.constant dense<0.000000e+00> : vector<8x128xf32>
    %32 = tpu.matmul %30, %13, %cst_15 {dimension_numbers = #tpu.dot_dimension_numbers<[1], [0], [0], [1], [0, 0, 1, 1], [], []>} : vector<8x128xf32>, vector<128x128xf32>, vector<8x128xf32> -> vector<8x128xf32>
    %33 = arith.addf %31, %32 : vector<8x128xf32>
    %34 = math.tanh %33 : vector<8x128xf32>
    %35 = vector.extract_strided_slice %12 {offsets = [40, 0], sizes = [8, 128], strides = [1, 1]} : vector<64x128xf32> to vector<8x128xf32>
    %cst_16 = arith.constant dense<0.000000e+00> : vector<8x128xf32>
    %36 = tpu.matmul %34, %13, %cst_16 {dimension_numbers = #tpu.dot_dimension_numbers<[1], [0], [0], [1], [0, 0, 1, 1], [], []>} : vector<8x128xf32>, vector<128x128xf32>, vector<8x128xf32> -> vector<8x128xf32>
    %37 = arith.addf %35, %36 : vector<8x128xf32>
    %38 = math.tanh %37 : vector<8x128xf32>
    %39 = vector.extract_strided_slice %12 {offsets = [48, 0], sizes = [8, 128], strides = [1, 1]} : vector<64x128xf32> to vector<8x128xf32>
    %cst_17 = arith.constant dense<0.000000e+00> : vector<8x128xf32>
    %40 = tpu.matmul %38, %13, %cst_17 {dimension_numbers = #tpu.dot_dimension_numbers<[1], [0], [0], [1], [0, 0, 1, 1], [], []>} : vector<8x128xf32>, vector<128x128xf32>, vector<8x128xf32> -> vector<8x128xf32>
    %41 = arith.addf %39, %40 : vector<8x128xf32>
    %42 = math.tanh %41 : vector<8x128xf32>
    %43 = vector.extract_strided_slice %12 {offsets = [56, 0], sizes = [8, 128], strides = [1, 1]} : vector<64x128xf32> to vector<8x128xf32>
    %cst_18 = arith.constant dense<0.000000e+00> : vector<8x128xf32>
    %44 = tpu.matmul %42, %13, %cst_18 {dimension_numbers = #tpu.dot_dimension_numbers<[1], [0], [0], [1], [0, 0, 1, 1], [], []>} : vector<8x128xf32>, vector<128x128xf32>, vector<8x128xf32> -> vector<8x128xf32>
    %45 = arith.addf %43, %44 : vector<8x128xf32>
    %46 = math.tanh %45 : vector<8x128xf32>
    %c0_19 = arith.constant 0 : index
    %c0_20 = arith.constant 0 : index
    %47 = vector.load %arg5[%c0_19, %c0_20] : memref<128x256xf32, #tpu.memory_space<vmem>>, vector<128x256xf32>
    %cst_21 = arith.constant dense<0.000000e+00> : vector<8x256xf32>
    %48 = tpu.matmul %46, %47, %cst_21 {dimension_numbers = #tpu.dot_dimension_numbers<[1], [0], [0], [1], [0, 0, 1, 1], [], []>} : vector<8x128xf32>, vector<128x256xf32>, vector<8x256xf32> -> vector<8x256xf32>
    %c0_22 = arith.constant 0 : index
    %c0_23 = arith.constant 0 : index
    %49 = vector.load %arg6[%c0_22, %c0_23] : memref<1x256xf32, #tpu.memory_space<vmem>>, vector<1x256xf32>
    %50 = vector.broadcast %49 : vector<1x256xf32> to vector<8x256xf32>
    %51 = arith.addf %48, %50 : vector<8x256xf32>
    %cst_24 = arith.constant 0.000000e+00 : f32
    %52 = vector.broadcast %cst_24 : f32 to vector<8x256xf32>
    %53 = arith.maximumf %51, %52 : vector<8x256xf32>
    %c0_25 = arith.constant 0 : index
    %c0_26 = arith.constant 0 : index
    %54 = vector.load %arg7[%c0_25, %c0_26] : memref<1x256xf32, #tpu.memory_space<vmem>>, vector<1x256xf32>
    %55 = vector.broadcast %54 : vector<1x256xf32> to vector<8x256xf32>
    %56 = arith.mulf %53, %55 : vector<8x256xf32>
    %cst_27 = arith.constant dense<0.000000e+00> : vector<8xf32>
    %57 = vector.multi_reduction <add>, %56, %cst_27 [1] : vector<8x256xf32> to vector<8xf32>
    %58 = vector.shape_cast %57 : vector<8xf32> to vector<8x1xf32>
    %c0_28 = arith.constant 0 : index
    %c0_29 = arith.constant 0 : index
    %59 = vector.load %arg8[%c0_28, %c0_29] : memref<1x1xf32, #tpu.memory_space<vmem>>, vector<1x1xf32>
    %60 = vector.broadcast %59 : vector<1x1xf32> to vector<8x1xf32>
    %61 = arith.addf %58, %60 : vector<8x1xf32>
    %62 = vector.shape_cast %61 : vector<8x1xf32> to vector<8x1xf32>
    %63 = vector.broadcast %62 : vector<8x1xf32> to vector<8x128xf32>
    %c0_30 = arith.constant 0 : index
    %c0_31 = arith.constant 0 : index
    %64 = vector.load %arg9[%c0_30, %c0_31] : memref<8x128xf32, #tpu.memory_space<vmem>>, vector<8x128xf32>
    tpu.vector_store %arg9[%c0_30, %c0_31], %63 {strides = array<i32>} : memref<8x128xf32, #tpu.memory_space<vmem>>, vector<8x128xf32>,
    return
  }
}

</mosaic_0001>

<llo_original>
// kernel: recurrent_model_forward.1
$region0: #{recurrent_model_forward.1}
  #allocation0 [shape = 'u32[]', space=smem, size = 0x4, offset = 0x4, fixed_abs, tag = 'smem constant byte address 0x4 - core index']
  #allocation1 [shape = 'u32[144,128]{1,0:T(1,128)}', space=vmem, size = 0x12000, scoped, tag = 'internal scratch']
  #allocation2 [shape = 'f32[1,1]{1,0:T(1,128)S(1)}', space=vmem, size = 0x200, scoped, tag = 'scoped memory for recurrent_model_forward.1']
  %s0 = inlined_call_operand.vmem [shape: s32[64,1], index: 0, kind: input, shape index: {}]
  %s1 = inlined_call_operand.vmem [shape: f32[128,128], index: 1, kind: input, shape index: {}]
  %s2 = inlined_call_operand.vmem [shape: f32[128,128], index: 2, kind: input, shape index: {}]
  %s3 = inlined_call_operand.vmem [shape: f32[128,128], index: 3, kind: input, shape index: {}]
  %s4 = inlined_call_operand.vmem [shape: f32[1,128], index: 4, kind: input, shape index: {}]
  %s5 = inlined_call_operand.vmem [shape: f32[128,256], index: 5, kind: input, shape index: {}]
  %s6 = inlined_call_operand.vmem [shape: f32[1,256], index: 6, kind: input, shape index: {}]
  %s7 = inlined_call_operand.vmem [shape: f32[1,256], index: 7, kind: input, shape index: {}]
  %s8 = inlined_call_operand.<no memory space> [shape: f32[1,1], index: 8, kind: input, shape index: {}]
  %s9 = inlined_call_operand.vmem [shape: f32[8,128], index: 9, kind: output, shape index: {}]
  %s10 = sld [smem:[#allocation0]]
  $region46: #{recurrent_model_forward.1} parent=0
    _
  %s12 = ssub.s32 1, %s10
  %s13 = scalar_select 0, %s12, %s10
  %v14 = vstv %s8
  %15 = vst [vmem:[#allocation2] sm:$0x1] %v14
  // Predicated region
  $region2: #{recurrent_model_forward.1} parent=0 // pred_check
    _
  $region3: #{recurrent_model_forward.1} parent=0 // pred_check_branch
    %17 = sbr.rel (0) target = $region5
  $region4: #{recurrent_model_forward.1} parent=0 // pred_region
    _
  $region5: #{recurrent_model_forward.1} parent=0 // pred_fallthru
    _
  // Predicated region
  $region6: #{recurrent_model_forward.1} parent=0 // pred_check
    _
  $region7: #{recurrent_model_forward.1} parent=0 // pred_check_branch
    %19 = sbr.rel (0) target = $region9
  $region8: #{recurrent_model_forward.1} parent=0 // pred_region
    _
  $region9: #{recurrent_model_forward.1} parent=0 // pred_fallthru
    _
  // Predicated region
  $region10: #{recurrent_model_forward.1} parent=0 // pred_check
    _
  $region11: #{recurrent_model_forward.1} parent=0 // pred_check_branch
    %21 = sbr.rel (0) target = $region13
  $region12: #{recurrent_model_forward.1} parent=0 // pred_region
    _
  $region13: #{recurrent_model_forward.1} parent=0 // pred_fallthru
    _
  // Predicated region
  $region14: #{recurrent_model_forward.1} parent=0 // pred_check
    _
  $region15: #{recurrent_model_forward.1} parent=0 // pred_check_branch
    %23 = sbr.rel (0) target = $region17
  $region16: #{recurrent_model_forward.1} parent=0 // pred_region
    _
  $region17: #{recurrent_model_forward.1} parent=0 // pred_fallthru
    _
  // Predicated region
  $region18: #{recurrent_model_forward.1} parent=0 // pred_check
    _
  $region19: #{recurrent_model_forward.1} parent=0 // pred_check_branch
    %25 = sbr.rel (0) target = $region21
  $region20: #{recurrent_model_forward.1} parent=0 // pred_region
    _
  $region21: #{recurrent_model_forward.1} parent=0 // pred_fallthru
    _
  // Predicated region
  $region22: #{recurrent_model_forward.1} parent=0 // pred_check
    _
  $region23: #{recurrent_model_forward.1} parent=0 // pred_check_branch
    %27 = sbr.rel (0) target = $region25
  $region24: #{recurrent_model_forward.1} parent=0 // pred_region
    _
  $region25: #{recurrent_model_forward.1} parent=0 // pred_fallthru
    _
  // Predicated region
  $region26: #{recurrent_model_forward.1} parent=0 // pred_check
    _
  $region27: #{recurrent_model_forward.1} parent=0 // pred_check_branch
    %29 = sbr.rel (0) target = $region29
  $region28: #{recurrent_model_forward.1} parent=0 // pred_region
    _
  $region29: #{recurrent_model_forward.1} parent=0 // pred_fallthru
    _
  // Predicated region
  $region30: #{recurrent_model_forward.1} parent=0 // pred_check
    _
  $region31: #{recurrent_model_forward.1} parent=0 // pred_check_branch
    %31 = sbr.rel (0) target = $region33
  $region32: #{recurrent_model_forward.1} parent=0 // pred_region
    _
  $region33: #{recurrent_model_forward.1} parent=0 // pred_fallthru
    _
  // Predicated region
  $region34: #{recurrent_model_forward.1} parent=0 // pred_check
    _
  $region35: #{recurrent_model_forward.1} parent=0 // pred_check_branch
    %33 = sbr.rel (0) target = $region37
  $region36: #{recurrent_model_forward.1} parent=0 // pred_region
    _
  $region37: #{recurrent_model_forward.1} parent=0 // pred_fallthru
    _
  %v34 = vld [vmem:[%s0] sm:$0xff]
  %v35 = vld [vmem:[%s0 + $0x8] sm:$0xff]
  %v36 = vld [vmem:[%s0 + $0x10] sm:$0xff]
  %v37 = vld [vmem:[%s0 + $0x18] sm:$0xff]
  %v38 = vld [vmem:[%s0 + $0x20] sm:$0xff]
  %v39 = vld [vmem:[%s0 + $0x28] sm:$0xff]
  %v40 = vld [vmem:[%s0 + $0x30] sm:$0xff]
  %v41 = vld [vmem:[%s0 + $0x38] sm:$0xff]
  %v42 = vlaneseq
  %v43 = vand.u32 %v42, 127
  %44 = vset.pattern.permute.xlu0 0
  %45 = vperm.xlu0 %44, %v34
  %v46 = vpop.permute.xlu0 %45
  %47 = vset.pattern.permute.xlu0 0
  %48 = vperm.xlu0 %47, %v35
  %v49 = vpop.permute.xlu0 %48
  %50 = vset.pattern.permute.xlu0 0
  %51 = vperm.xlu0 %50, %v36
  %v52 = vpop.permute.xlu0 %51
  %53 = vset.pattern.permute.xlu0 0
  %54 = vperm.xlu0 %53, %v37
  %v55 = vpop.permute.xlu0 %54
  %56 = vset.pattern.permute.xlu0 0
  %57 = vperm.xlu0 %56, %v38
  %v58 = vpop.permute.xlu0 %57
  %59 = vset.pattern.permute.xlu0 0
  %60 = vperm.xlu0 %59, %v39
  %v61 = vpop.permute.xlu0 %60
  %62 = vset.pattern.permute.xlu0 0
  %63 = vperm.xlu0 %62, %v40
  %v64 = vpop.permute.xlu0 %63
  %65 = vset.pattern.permute.xlu0 0
  %66 = vperm.xlu0 %65, %v41
  %v67 = vpop.permute.xlu0 %66
  %vm68 = vcmp.eq.s32.totalorder %v43, %v46
  %vm69 = vcmp.eq.s32.totalorder %v43, %v49
  %vm70 = vcmp.eq.s32.totalorder %v43, %v52
  %vm71 = vcmp.eq.s32.totalorder %v43, %v55
  %vm72 = vcmp.eq.s32.totalorder %v43, %v58
  %vm73 = vcmp.eq.s32.totalorder %v43, %v61
  %vm74 = vcmp.eq.s32.totalorder %v43, %v64
  %vm75 = vcmp.eq.s32.totalorder %v43, %v67
  %v76 = vsel %vm68, 1, 0
  %v77 = vsel %vm69, 1, 0
  %v78 = vsel %vm70, 1, 0
  %v79 = vsel %vm71, 1, 0
  %v80 = vsel %vm72, 1, 0
  %v81 = vsel %vm73, 1, 0
  %v82 = vsel %vm74, 1, 0
  %v83 = vsel %vm75, 1, 0
  %v84 = vcvt.s32.f32 %v76
  %v85 = vcvt.s32.f32 %v77
  %v86 = vcvt.s32.f32 %v78
  %v87 = vcvt.s32.f32 %v79
  %v88 = vcvt.s32.f32 %v80
  %v89 = vcvt.s32.f32 %v81
  %v90 = vcvt.s32.f32 %v82
  %v91 = vcvt.s32.f32 %v83
  %v92 = vld [vmem:[%s1] sm:$0xff]
  %v93 = vld [vmem:[%s1 + $0x8] sm:$0xff]
  %v94 = vld [vmem:[%s1 + $0x10] sm:$0xff]
  %v95 = vld [vmem:[%s1 + $0x18] sm:$0xff]
  %v96 = vld [vmem:[%s1 + $0x20] sm:$0xff]
  %v97 = vld [vmem:[%s1 + $0x28] sm:$0xff]
  %v98 = vld [vmem:[%s1 + $0x30] sm:$0xff]
  %v99 = vld [vmem:[%s1 + $0x38] sm:$0xff]
  %v100 = vld [vmem:[%s1 + $0x40] sm:$0xff]
  %v101 = vld [vmem:[%s1 + $0x48] sm:$0xff]
  %v102 = vld [vmem:[%s1 + $0x50] sm:$0xff]
  %v103 = vld [vmem:[%s1 + $0x58] sm:$0xff]
  %v104 = vld [vmem:[%s1 + $0x60] sm:$0xff]
  %v105 = vld [vmem:[%s1 + $0x68] sm:$0xff]
  %v106 = vld [vmem:[%s1 + $0x70] sm:$0xff]
  %v107 = vld [vmem:[%s1 + $0x78] sm:$0xff]
  %108 = vmatprep.subr.mxu0 0.0
  %109 = vmatpush1.msra.mxu0 %v107
  %110 = vmatprep.subr.mxu0 0.0
  %111 = vmatpush1.msra.mxu0 %v106
  %112 = vmatprep.subr.mxu0 0.0
  %113 = vmatpush1.msra.mxu0 %v105
  %114 = vmatprep.subr.mxu0 0.0
  %115 = vmatpush1.msra.mxu0 %v104
  %116 = vmatprep.subr.mxu0 0.0
  %117 = vmatpush1.msra.mxu0 %v103
  %118 = vmatprep.subr.mxu0 0.0
  %119 = vmatpush1.msra.mxu0 %v102
  %120 = vmatprep.subr.mxu0 0.0
  %121 = vmatpush1.msra.mxu0 %v101
  %122 = vmatprep.subr.mxu0 0.0
  %123 = vmatpush1.msra.mxu0 %v100
  %124 = vmatprep.subr.mxu0 0.0
  %125 = vmatpush1.msra.mxu0 %v99
  %126 = vmatprep.subr.mxu0 0.0
  %127 = vmatpush1.msra.mxu0 %v98
  %128 = vmatprep.subr.mxu0 0.0
  %129 = vmatpush1.msra.mxu0 %v97
  %130 = vmatprep.subr.mxu0 0.0
  %131 = vmatpush1.msra.mxu0 %v96
  %132 = vmatprep.subr.mxu0 0.0
  %133 = vmatpush1.msra.mxu0 %v95
  %134 = vmatprep.subr.mxu0 0.0
  %135 = vmatpush1.msra.mxu0 %v94
  %136 = vmatprep.subr.mxu0 0.0
  %137 = vmatpush1.msra.mxu0 %v93
  %138 = vmatprep.subr.mxu0 0.0
  %139 = vmatpush1.msra.mxu0 %v92
  %140 = vmatprep.subr.mxu0 0.0
  %141 = vmatpush2.msra.mxu0 0.0
  %142 = vmatprep.subr.mxu0 0.0
  %143 = vmatpush2.msra.mxu0 0.0
  %144 = vmatprep.subr.mxu0 0.0
  %145 = vmatpush2.msra.mxu0 0.0
  %146 = vmatprep.subr.mxu0 0.0
  %147 = vmatpush2.msra.mxu0 0.0
  %148 = vmatprep.subr.mxu0 0.0
  %149 = vmatpush2.msra.mxu0 0.0
  %150 = vmatprep.subr.mxu0 0.0
  %151 = vmatpush2.msra.mxu0 0.0
  %152 = vmatprep.subr.mxu0 0.0
  %153 = vmatpush2.msra.mxu0 0.0
  %154 = vmatprep.subr.mxu0 0.0
  %155 = vmatpush2.msra.mxu0 0.0
  %156 = vmatprep.subr.mxu0 0.0
  %157 = vmatpush2.msra.mxu0 0.0
  %158 = vmatprep.subr.mxu0 0.0
  %159 = vmatpush2.msra.mxu0 0.0
  %160 = vmatprep.subr.mxu0 0.0
  %161 = vmatpush2.msra.mxu0 0.0
  %162 = vmatprep.subr.mxu0 0.0
  %163 = vmatpush2.msra.mxu0 0.0
  %164 = vmatprep.subr.mxu0 0.0
  %165 = vmatpush2.msra.mxu0 0.0
  %166 = vmatprep.subr.mxu0 0.0
  %167 = vmatpush2.msra.mxu0 0.0
  %168 = vmatprep.subr.mxu0 0.0
  %169 = vmatpush2.msra.mxu0 0.0
  %170 = vmatprep.subr.mxu0 0.0
  %171 = vmatpush2.msra.mxu0 0.0
  %172 = vmatprep.mubr.f32.mxu0 0.0
  %173 = vmatmul.mubr.f32.gmra.mxu0 %v84
  %v174 = vpop.f32.mrf.mxu0
  %v175 = vadd.f32 0.0, %v174
  %v176 = vpop.f32.mrf.mxu0
  %177 = vmatprep.mubr.f32.mxu0 0.0
  %178 = vmatmul.mubr.f32.gmra.mxu0 %v85
  %v179 = vpop.f32.mrf.mxu0
  %v180 = vadd.f32 0.0, %v179
  %v181 = vpop.f32.mrf.mxu0
  %182 = vmatprep.mubr.f32.mxu0 0.0
  %183 = vmatmul.mubr.f32.gmra.mxu0 %v86
  %v184 = vpop.f32.mrf.mxu0
  %v185 = vadd.f32 0.0, %v184
  %v186 = vpop.f32.mrf.mxu0
  %187 = vmatprep.mubr.f32.mxu0 0.0
  %188 = vmatmul.mubr.f32.gmra.mxu0 %v87
  %v189 = vpop.f32.mrf.mxu0
  %v190 = vadd.f32 0.0, %v189
  %v191 = vpop.f32.mrf.mxu0
  %192 = vmatprep.mubr.f32.mxu0 0.0
  %193 = vmatmul.mubr.f32.gmra.mxu0 %v88
  %v194 = vpop.f32.mrf.mxu0
  %v195 = vadd.f32 0.0, %v194
  %v196 = vpop.f32.mrf.mxu0
  %197 = vmatprep.mubr.f32.mxu0 0.0
  %198 = vmatmul.mubr.f32.gmra.mxu0 %v89
  %v199 = vpop.f32.mrf.mxu0
  %v200 = vadd.f32 0.0, %v199
  %v201 = vpop.f32.mrf.mxu0
  %202 = vmatprep.mubr.f32.mxu0 0.0
  %203 = vmatmul.mubr.f32.gmra.mxu0 %v90
  %v204 = vpop.f32.mrf.mxu0
  %v205 = vadd.f32 0.0, %v204
  %v206 = vpop.f32.mrf.mxu0
  %207 = vmatprep.mubr.f32.mxu0 0.0
  %208 = vmatmul.mubr.f32.gmra.mxu0 %v91
  %v209 = vpop.f32.mrf.mxu0
  %v210 = vadd.f32 0.0, %v209
  %v211 = vpop.f32.mrf.mxu0
  %212 = vdwg.mxu0
  %v213 = vld [vmem:[%s2] sm:$0xff]
  %v214 = vld [vmem:[%s2 + $0x8] sm:$0xff]
  %v215 = vld [vmem:[%s2 + $0x10] sm:$0xff]
  %v216 = vld [vmem:[%s2 + $0x18] sm:$0xff]
  %v217 = vld [vmem:[%s2 + $0x20] sm:$0xff]
  %v218 = vld [vmem:[%s2 + $0x28] sm:$0xff]
  %v219 = vld [vmem:[%s2 + $0x30] sm:$0xff]
  %v220 = vld [vmem:[%s2 + $0x38] sm:$0xff]
  %v221 = vld [vmem:[%s2 + $0x40] sm:$0xff]
  %v222 = vld [vmem:[%s2 + $0x48] sm:$0xff]
  %v223 = vld [vmem:[%s2 + $0x50] sm:$0xff]
  %v224 = vld [vmem:[%s2 + $0x58] sm:$0xff]
  %v225 = vld [vmem:[%s2 + $0x60] sm:$0xff]
  %v226 = vld [vmem:[%s2 + $0x68] sm:$0xff]
  %v227 = vld [vmem:[%s2 + $0x70] sm:$0xff]
  %v228 = vld [vmem:[%s2 + $0x78] sm:$0xff]
  %v229 = vld [vmem:[%s4] sm:$0x1]
  %v231 = vlaneseq
  %v232 = vshrl.u32 %v231, 7
  %v233 = vsub.s32 0, %v232
  %v234 = vrot.slane %v229, %v233
  %236 = vmatprep.subr.mxu0 0.0
  %237 = vmatpush1.msra.mxu0 %v228
  %238 = vmatprep.subr.mxu0 0.0
  %239 = vmatpush1.msra.mxu0 %v227
  %240 = vmatprep.subr.mxu0 0.0
  %241 = vmatpush1.msra.mxu0 %v226
  %242 = vmatprep.subr.mxu0 0.0
  %243 = vmatpush1.msra.mxu0 %v225
  %244 = vmatprep.subr.mxu0 0.0
  %245 = vmatpush1.msra.mxu0 %v224
  %246 = vmatprep.subr.mxu0 0.0
  %247 = vmatpush1.msra.mxu0 %v223
  %248 = vmatprep.subr.mxu0 0.0
  %249 = vmatpush1.msra.mxu0 %v222
  %250 = vmatprep.subr.mxu0 0.0
  %251 = vmatpush1.msra.mxu0 %v221
  %252 = vmatprep.subr.mxu0 0.0
  %253 = vmatpush1.msra.mxu0 %v220
  %254 = vmatprep.subr.mxu0 0.0
  %255 = vmatpush1.msra.mxu0 %v219
  %256 = vmatprep.subr.mxu0 0.0
  %257 = vmatpush1.msra.mxu0 %v218
  %258 = vmatprep.subr.mxu0 0.0
  %259 = vmatpush1.msra.mxu0 %v217
  %260 = vmatprep.subr.mxu0 0.0
  %261 = vmatpush1.msra.mxu0 %v216
  %262 = vmatprep.subr.mxu0 0.0
  %263 = vmatpush1.msra.mxu0 %v215
  %264 = vmatprep.subr.mxu0 0.0
  %265 = vmatpush1.msra.mxu0 %v214
  %266 = vmatprep.subr.mxu0 0.0
  %267 = vmatpush1.msra.mxu0 %v213
  %268 = vmatprep.subr.mxu0 0.0
  %269 = vmatpush2.msra.mxu0 0.0
  %270 = vmatprep.subr.mxu0 0.0
  %271 = vmatpush2.msra.mxu0 0.0
  %272 = vmatprep.subr.mxu0 0.0
  %273 = vmatpush2.msra.mxu0 0.0
  %274 = vmatprep.subr.mxu0 0.0
  %275 = vmatpush2.msra.mxu0 0.0
  %276 = vmatprep.subr.mxu0 0.0
  %277 = vmatpush2.msra.mxu0 0.0
  %278 = vmatprep.subr.mxu0 0.0
  %279 = vmatpush2.msra.mxu0 0.0
  %280 = vmatprep.subr.mxu0 0.0
  %281 = vmatpush2.msra.mxu0 0.0
  %282 = vmatprep.subr.mxu0 0.0
  %283 = vmatpush2.msra.mxu0 0.0
  %284 = vmatprep.subr.mxu0 0.0
  %285 = vmatpush2.msra.mxu0 0.0
  %286 = vmatprep.subr.mxu0 0.0
  %287 = vmatpush2.msra.mxu0 0.0
  %288 = vmatprep.subr.mxu0 0.0
  %289 = vmatpush2.msra.mxu0 0.0
  %290 = vmatprep.subr.mxu0 0.0
  %291 = vmatpush2.msra.mxu0 0.0
  %292 = vmatprep.subr.mxu0 0.0
  %293 = vmatpush2.msra.mxu0 0.0
  %294 = vmatprep.subr.mxu0 0.0
  %295 = vmatpush2.msra.mxu0 0.0
  %296 = vmatprep.subr.mxu0 0.0
  %297 = vmatpush2.msra.mxu0 0.0
  %298 = vmatprep.subr.mxu0 0.0
  %299 = vmatpush2.msra.mxu0 0.0
  %300 = vmatprep.mubr.f32.mxu0 0.0
  %301 = vmatmul.mubr.f32.gmra.mxu0 %v175
  %v302 = vpop.f32.mrf.mxu0
  %v303 = vadd.f32 %v234, %v302
  %v304 = vpop.f32.mrf.mxu0
  %305 = vmatprep.mubr.f32.mxu0 0.0
  %306 = vmatmul.mubr.f32.gmra.mxu0 %v180
  %v307 = vpop.f32.mrf.mxu0
  %v308 = vadd.f32 %v234, %v307
  %v309 = vpop.f32.mrf.mxu0
  %310 = vmatprep.mubr.f32.mxu0 0.0
  %311 = vmatmul.mubr.f32.gmra.mxu0 %v185
  %v312 = vpop.f32.mrf.mxu0
  %v313 = vadd.f32 %v234, %v312
  %v314 = vpop.f32.mrf.mxu0
  %315 = vmatprep.mubr.f32.mxu0 0.0
  %316 = vmatmul.mubr.f32.gmra.mxu0 %v190
  %v317 = vpop.f32.mrf.mxu0
  %v318 = vadd.f32 %v234, %v317
  %v319 = vpop.f32.mrf.mxu0
  %320 = vmatprep.mubr.f32.mxu0 0.0
  %321 = vmatmul.mubr.f32.gmra.mxu0 %v195
  %v322 = vpop.f32.mrf.mxu0
  %v323 = vadd.f32 %v234, %v322
  %v324 = vpop.f32.mrf.mxu0
  %325 = vmatprep.mubr.f32.mxu0 0.0
  %326 = vmatmul.mubr.f32.gmra.mxu0 %v200
  %v327 = vpop.f32.mrf.mxu0
  %v328 = vadd.f32 %v234, %v327
  %v329 = vpop.f32.mrf.mxu0
  %330 = vmatprep.mubr.f32.mxu0 0.0
  %331 = vmatmul.mubr.f32.gmra.mxu0 %v205
  %v332 = vpop.f32.mrf.mxu0
  %v333 = vadd.f32 %v234, %v332
  %v334 = vpop.f32.mrf.mxu0
  %335 = vmatprep.mubr.f32.mxu0 0.0
  %336 = vmatmul.mubr.f32.gmra.mxu0 %v210
  %v337 = vpop.f32.mrf.mxu0
  %v338 = vadd.f32 %v234, %v337
  %v339 = vpop.f32.mrf.mxu0
  %340 = vdwg.mxu0
  %v341 = vld [vmem:[%s3] sm:$0xff]
  %v342 = vld [vmem:[%s3 + $0x8] sm:$0xff]
  %v343 = vld [vmem:[%s3 + $0x10] sm:$0xff]
  %v344 = vld [vmem:[%s3 + $0x18] sm:$0xff]
  %v345 = vld [vmem:[%s3 + $0x20] sm:$0xff]
  %v346 = vld [vmem:[%s3 + $0x28] sm:$0xff]
  %v347 = vld [vmem:[%s3 + $0x30] sm:$0xff]
  %v348 = vld [vmem:[%s3 + $0x38] sm:$0xff]
  %v349 = vld [vmem:[%s3 + $0x40] sm:$0xff]
  %v350 = vld [vmem:[%s3 + $0x48] sm:$0xff]
  %v351 = vld [vmem:[%s3 + $0x50] sm:$0xff]
  %v352 = vld [vmem:[%s3 + $0x58] sm:$0xff]
  %v353 = vld [vmem:[%s3 + $0x60] sm:$0xff]
  %v354 = vld [vmem:[%s3 + $0x68] sm:$0xff]
  %v355 = vld [vmem:[%s3 + $0x70] sm:$0xff]
  %v356 = vld [vmem:[%s3 + $0x78] sm:$0xff]
  %357 = vmatprep.subr.mxu0 0.0
  %358 = vmatpush1.msra.mxu0 %v356
  %359 = vmatprep.subr.mxu0 0.0
  %360 = vmatpush1.msra.mxu0 %v355
  %361 = vmatprep.subr.mxu0 0.0
  %362 = vmatpush1.msra.mxu0 %v354
  %363 = vmatprep.subr.mxu0 0.0
  %364 = vmatpush1.msra.mxu0 %v353
  %365 = vmatprep.subr.mxu0 0.0
  %366 = vmatpush1.msra.mxu0 %v352
  %367 = vmatprep.subr.mxu0 0.0
  %368 = vmatpush1.msra.mxu0 %v351
  %369 = vmatprep.subr.mxu0 0.0
  %370 = vmatpush1.msra.mxu0 %v350
  %371 = vmatprep.subr.mxu0 0.0
  %372 = vmatpush1.msra.mxu0 %v349
  %373 = vmatprep.subr.mxu0 0.0
  %374 = vmatpush1.msra.mxu0 %v348
  %375 = vmatprep.subr.mxu0 0.0
  %376 = vmatpush1.msra.mxu0 %v347
  %377 = vmatprep.subr.mxu0 0.0
  %378 = vmatpush1.msra.mxu0 %v346
  %379 = vmatprep.subr.mxu0 0.0
  %380 = vmatpush1.msra.mxu0 %v345
  %381 = vmatprep.subr.mxu0 0.0
  %382 = vmatpush1.msra.mxu0 %v344
  %383 = vmatprep.subr.mxu0 0.0
  %384 = vmatpush1.msra.mxu0 %v343
  %385 = vmatprep.subr.mxu0 0.0
  %386 = vmatpush1.msra.mxu0 %v342
  %387 = vmatprep.subr.mxu0 0.0
  %388 = vmatpush1.msra.mxu0 %v341
  %389 = vmatprep.subr.mxu0 0.0
  %390 = vmatpush2.msra.mxu0 0.0
  %391 = vmatprep.subr.mxu0 0.0
  %392 = vmatpush2.msra.mxu0 0.0
  %393 = vmatprep.subr.mxu0 0.0
  %394 = vmatpush2.msra.mxu0 0.0
  %395 = vmatprep.subr.mxu0 0.0
  %396 = vmatpush2.msra.mxu0 0.0
  %397 = vmatprep.subr.mxu0 0.0
  %398 = vmatpush2.msra.mxu0 0.0
  %399 = vmatprep.subr.mxu0 0.0
  %400 = vmatpush2.msra.mxu0 0.0
  %401 = vmatprep.subr.mxu0 0.0
  %402 = vmatpush2.msra.mxu0 0.0
  %403 = vmatprep.subr.mxu0 0.0
  %404 = vmatpush2.msra.mxu0 0.0
  %405 = vmatprep.subr.mxu0 0.0
  %406 = vmatpush2.msra.mxu0 0.0
  %407 = vmatprep.subr.mxu0 0.0
  %408 = vmatpush2.msra.mxu0 0.0
  %409 = vmatprep.subr.mxu0 0.0
  %410 = vmatpush2.msra.mxu0 0.0
  %411 = vmatprep.subr.mxu0 0.0
  %412 = vmatpush2.msra.mxu0 0.0
  %413 = vmatprep.subr.mxu0 0.0
  %414 = vmatpush2.msra.mxu0 0.0
  %415 = vmatprep.subr.mxu0 0.0
  %416 = vmatpush2.msra.mxu0 0.0
  %417 = vmatprep.subr.mxu0 0.0
  %418 = vmatpush2.msra.mxu0 0.0
  %419 = vmatprep.subr.mxu0 0.0
  %420 = vmatpush2.msra.mxu0 0.0
  %421 = vmatprep.mubr.f32.mxu0 0.0
  %422 = vmatmul.mubr.f32.gmra.mxu0 0.0
  %v423 = vpop.f32.mrf.mxu0
  %v424 = vadd.f32 0.0, %v423
  %v425 = vpop.f32.mrf.mxu0
  %426 = vdwg.mxu0
  %v427 = vadd.f32 %v303, %v424
  %v428 = vtanh.pop %v427
  %429 = vmatprep.subr.mxu0 0.0
  %430 = vmatpush1.msra.mxu0 %v356
  %431 = vmatprep.subr.mxu0 0.0
  %432 = vmatpush1.msra.mxu0 %v355
  %433 = vmatprep.subr.mxu0 0.0
  %434 = vmatpush1.msra.mxu0 %v354
  %435 = vmatprep.subr.mxu0 0.0
  %436 = vmatpush1.msra.mxu0 %v353
  %437 = vmatprep.subr.mxu0 0.0
  %438 = vmatpush1.msra.mxu0 %v352
  %439 = vmatprep.subr.mxu0 0.0
  %440 = vmatpush1.msra.mxu0 %v351
  %441 = vmatprep.subr.mxu0 0.0
  %442 = vmatpush1.msra.mxu0 %v350
  %443 = vmatprep.subr.mxu0 0.0
  %444 = vmatpush1.msra.mxu0 %v349
  %445 = vmatprep.subr.mxu0 0.0
  %446 = vmatpush1.msra.mxu0 %v348
  %447 = vmatprep.subr.mxu0 0.0
  %448 = vmatpush1.msra.mxu0 %v347
  %449 = vmatprep.subr.mxu0 0.0
  %450 = vmatpush1.msra.mxu0 %v346
  %451 = vmatprep.subr.mxu0 0.0
  %452 = vmatpush1.msra.mxu0 %v345
  %453 = vmatprep.subr.mxu0 0.0
  %454 = vmatpush1.msra.mxu0 %v344
  %455 = vmatprep.subr.mxu0 0.0
  %456 = vmatpush1.msra.mxu0 %v343
  %457 = vmatprep.subr.mxu0 0.0
  %458 = vmatpush1.msra.mxu0 %v342
  %459 = vmatprep.subr.mxu0 0.0
  %460 = vmatpush1.msra.mxu0 %v341
  %461 = vmatprep.subr.mxu0 0.0
  %462 = vmatpush2.msra.mxu0 0.0
  %463 = vmatprep.subr.mxu0 0.0
  %464 = vmatpush2.msra.mxu0 0.0
  %465 = vmatprep.subr.mxu0 0.0
  %466 = vmatpush2.msra.mxu0 0.0
  %467 = vmatprep.subr.mxu0 0.0
  %468 = vmatpush2.msra.mxu0 0.0
  %469 = vmatprep.subr.mxu0 0.0
  %470 = vmatpush2.msra.mxu0 0.0
  %471 = vmatprep.subr.mxu0 0.0
  %472 = vmatpush2.msra.mxu0 0.0
  %473 = vmatprep.subr.mxu0 0.0
  %474 = vmatpush2.msra.mxu0 0.0
  %475 = vmatprep.subr.mxu0 0.0
  %476 = vmatpush2.msra.mxu0 0.0
  %477 = vmatprep.subr.mxu0 0.0
  %478 = vmatpush2.msra.mxu0 0.0
  %479 = vmatprep.subr.mxu0 0.0
  %480 = vmatpush2.msra.mxu0 0.0
  %481 = vmatprep.subr.mxu0 0.0
  %482 = vmatpush2.msra.mxu0 0.0
  %483 = vmatprep.subr.mxu0 0.0
  %484 = vmatpush2.msra.mxu0 0.0
  %485 = vmatprep.subr.mxu0 0.0
  %486 = vmatpush2.msra.mxu0 0.0
  %487 = vmatprep.subr.mxu0 0.0
  %488 = vmatpush2.msra.mxu0 0.0
  %489 = vmatprep.subr.mxu0 0.0
  %490 = vmatpush2.msra.mxu0 0.0
  %491 = vmatprep.subr.mxu0 0.0
  %492 = vmatpush2.msra.mxu0 0.0
  %493 = vmatprep.mubr.f32.mxu0 0.0
  %494 = vmatmul.mubr.f32.gmra.mxu0 %v428
  %v495 = vpop.f32.mrf.mxu0
  %v496 = vadd.f32 0.0, %v495
  %v497 = vpop.f32.mrf.mxu0
  %498 = vdwg.mxu0
  %v499 = vadd.f32 %v308, %v496
  %v500 = vtanh.pop %v499
  %501 = vmatprep.subr.mxu0 0.0
  %502 = vmatpush1.msra.mxu0 %v356
  %503 = vmatprep.subr.mxu0 0.0
  %504 = vmatpush1.msra.mxu0 %v355
  %505 = vmatprep.subr.mxu0 0.0
  %506 = vmatpush1.msra.mxu0 %v354
  %507 = vmatprep.subr.mxu0 0.0
  %508 = vmatpush1.msra.mxu0 %v353
  %509 = vmatprep.subr.mxu0 0.0
  %510 = vmatpush1.msra.mxu0 %v352
  %511 = vmatprep.subr.mxu0 0.0
  %512 = vmatpush1.msra.mxu0 %v351
  %513 = vmatprep.subr.mxu0 0.0
  %514 = vmatpush1.msra.mxu0 %v350
  %515 = vmatprep.subr.mxu0 0.0
  %516 = vmatpush1.msra.mxu0 %v349
  %517 = vmatprep.subr.mxu0 0.0
  %518 = vmatpush1.msra.mxu0 %v348
  %519 = vmatprep.subr.mxu0 0.0
  %520 = vmatpush1.msra.mxu0 %v347
  %521 = vmatprep.subr.mxu0 0.0
  %522 = vmatpush1.msra.mxu0 %v346
  %523 = vmatprep.subr.mxu0 0.0
  %524 = vmatpush1.msra.mxu0 %v345
  %525 = vmatprep.subr.mxu0 0.0
  %526 = vmatpush1.msra.mxu0 %v344
  %527 = vmatprep.subr.mxu0 0.0
  %528 = vmatpush1.msra.mxu0 %v343
  %529 = vmatprep.subr.mxu0 0.0
  %530 = vmatpush1.msra.mxu0 %v342
  %531 = vmatprep.subr.mxu0 0.0
  %532 = vmatpush1.msra.mxu0 %v341
  %533 = vmatprep.subr.mxu0 0.0
  %534 = vmatpush2.msra.mxu0 0.0
  %535 = vmatprep.subr.mxu0 0.0
  %536 = vmatpush2.msra.mxu0 0.0
  %537 = vmatprep.subr.mxu0 0.0
  %538 = vmatpush2.msra.mxu0 0.0
  %539 = vmatprep.subr.mxu0 0.0
  %540 = vmatpush2.msra.mxu0 0.0
  %541 = vmatprep.subr.mxu0 0.0
  %542 = vmatpush2.msra.mxu0 0.0
  %543 = vmatprep.subr.mxu0 0.0
  %544 = vmatpush2.msra.mxu0 0.0
  %545 = vmatprep.subr.mxu0 0.0
  %546 = vmatpush2.msra.mxu0 0.0
  %547 = vmatprep.subr.mxu0 0.0
  %548 = vmatpush2.msra.mxu0 0.0
  %549 = vmatprep.subr.mxu0 0.0
  %550 = vmatpush2.msra.mxu0 0.0
  %551 = vmatprep.subr.mxu0 0.0
  %552 = vmatpush2.msra.mxu0 0.0
  %553 = vmatprep.subr.mxu0 0.0
  %554 = vmatpush2.msra.mxu0 0.0
  %555 = vmatprep.subr.mxu0 0.0
  %556 = vmatpush2.msra.mxu0 0.0
  %557 = vmatprep.subr.mxu0 0.0
  %558 = vmatpush2.msra.mxu0 0.0
  %559 = vmatprep.subr.mxu0 0.0
  %560 = vmatpush2.msra.mxu0 0.0
  %561 = vmatprep.subr.mxu0 0.0
  %562 = vmatpush2.msra.mxu0 0.0
  %563 = vmatprep.subr.mxu0 0.0
  %564 = vmatpush2.msra.mxu0 0.0
  %565 = vmatprep.mubr.f32.mxu0 0.0
  %566 = vmatmul.mubr.f32.gmra.mxu0 %v500
  %v567 = vpop.f32.mrf.mxu0
  %v568 = vadd.f32 0.0, %v567
  %v569 = vpop.f32.mrf.mxu0
  %570 = vdwg.mxu0
  %v571 = vadd.f32 %v313, %v568
  %v572 = vtanh.pop %v571
  %573 = vmatprep.subr.mxu0 0.0
  %574 = vmatpush1.msra.mxu0 %v356
  %575 = vmatprep.subr.mxu0 0.0
  %576 = vmatpush1.msra.mxu0 %v355
  %577 = vmatprep.subr.mxu0 0.0
  %578 = vmatpush1.msra.mxu0 %v354
  %579 = vmatprep.subr.mxu0 0.0
  %580 = vmatpush1.msra.mxu0 %v353
  %581 = vmatprep.subr.mxu0 0.0
  %582 = vmatpush1.msra.mxu0 %v352
  %583 = vmatprep.subr.mxu0 0.0
  %584 = vmatpush1.msra.mxu0 %v351
  %585 = vmatprep.subr.mxu0 0.0
  %586 = vmatpush1.msra.mxu0 %v350
  %587 = vmatprep.subr.mxu0 0.0
  %588 = vmatpush1.msra.mxu0 %v349
  %589 = vmatprep.subr.mxu0 0.0
  %590 = vmatpush1.msra.mxu0 %v348
  %591 = vmatprep.subr.mxu0 0.0
  %592 = vmatpush1.msra.mxu0 %v347
  %593 = vmatprep.subr.mxu0 0.0
  %594 = vmatpush1.msra.mxu0 %v346
  %595 = vmatprep.subr.mxu0 0.0
  %596 = vmatpush1.msra.mxu0 %v345
  %597 = vmatprep.subr.mxu0 0.0
  %598 = vmatpush1.msra.mxu0 %v344
  %599 = vmatprep.subr.mxu0 0.0
  %600 = vmatpush1.msra.mxu0 %v343
  %601 = vmatprep.subr.mxu0 0.0
  %602 = vmatpush1.msra.mxu0 %v342
  %603 = vmatprep.subr.mxu0 0.0
  %604 = vmatpush1.msra.mxu0 %v341
  %605 = vmatprep.subr.mxu0 0.0
  %606 = vmatpush2.msra.mxu0 0.0
  %607 = vmatprep.subr.mxu0 0.0
  %608 = vmatpush2.msra.mxu0 0.0
  %609 = vmatprep.subr.mxu0 0.0
  %610 = vmatpush2.msra.mxu0 0.0
  %611 = vmatprep.subr.mxu0 0.0
  %612 = vmatpush2.msra.mxu0 0.0
  %613 = vmatprep.subr.mxu0 0.0
  %614 = vmatpush2.msra.mxu0 0.0
  %615 = vmatprep.subr.mxu0 0.0
  %616 = vmatpush2.msra.mxu0 0.0
  %617 = vmatprep.subr.mxu0 0.0
  %618 = vmatpush2.msra.mxu0 0.0
  %619 = vmatprep.subr.mxu0 0.0
  %620 = vmatpush2.msra.mxu0 0.0
  %621 = vmatprep.subr.mxu0 0.0
  %622 = vmatpush2.msra.mxu0 0.0
  %623 = vmatprep.subr.mxu0 0.0
  %624 = vmatpush2.msra.mxu0 0.0
  %625 = vmatprep.subr.mxu0 0.0
  %626 = vmatpush2.msra.mxu0 0.0
  %627 = vmatprep.subr.mxu0 0.0
  %628 = vmatpush2.msra.mxu0 0.0
  %629 = vmatprep.subr.mxu0 0.0
  %630 = vmatpush2.msra.mxu0 0.0
  %631 = vmatprep.subr.mxu0 0.0
  %632 = vmatpush2.msra.mxu0 0.0
  %633 = vmatprep.subr.mxu0 0.0
  %634 = vmatpush2.msra.mxu0 0.0
  %635 = vmatprep.subr.mxu0 0.0
  %636 = vmatpush2.msra.mxu0 0.0
  %637 = vmatprep.mubr.f32.mxu0 0.0
  %638 = vmatmul.mubr.f32.gmra.mxu0 %v572
  %v639 = vpop.f32.mrf.mxu0
  %v640 = vadd.f32 0.0, %v639
  %v641 = vpop.f32.mrf.mxu0
  %642 = vdwg.mxu0
  %v643 = vadd.f32 %v318, %v640
  %v644 = vtanh.pop %v643
  %645 = vmatprep.subr.mxu0 0.0
  %646 = vmatpush1.msra.mxu0 %v356
  %647 = vmatprep.subr.mxu0 0.0
  %648 = vmatpush1.msra.mxu0 %v355
  %649 = vmatprep.subr.mxu0 0.0
  %650 = vmatpush1.msra.mxu0 %v354
  %651 = vmatprep.subr.mxu0 0.0
  %652 = vmatpush1.msra.mxu0 %v353
  %653 = vmatprep.subr.mxu0 0.0
  %654 = vmatpush1.msra.mxu0 %v352
  %655 = vmatprep.subr.mxu0 0.0
  %656 = vmatpush1.msra.mxu0 %v351
  %657 = vmatprep.subr.mxu0 0.0
  %658 = vmatpush1.msra.mxu0 %v350
  %659 = vmatprep.subr.mxu0 0.0
  %660 = vmatpush1.msra.mxu0 %v349
  %661 = vmatprep.subr.mxu0 0.0
  %662 = vmatpush1.msra.mxu0 %v348
  %663 = vmatprep.subr.mxu0 0.0
  %664 = vmatpush1.msra.mxu0 %v347
  %665 = vmatprep.subr.mxu0 0.0
  %666 = vmatpush1.msra.mxu0 %v346
  %667 = vmatprep.subr.mxu0 0.0
  %668 = vmatpush1.msra.mxu0 %v345
  %669 = vmatprep.subr.mxu0 0.0
  %670 = vmatpush1.msra.mxu0 %v344
  %671 = vmatprep.subr.mxu0 0.0
  %672 = vmatpush1.msra.mxu0 %v343
  %673 = vmatprep.subr.mxu0 0.0
  %674 = vmatpush1.msra.mxu0 %v342
  %675 = vmatprep.subr.mxu0 0.0
  %676 = vmatpush1.msra.mxu0 %v341
  %677 = vmatprep.subr.mxu0 0.0
  %678 = vmatpush2.msra.mxu0 0.0
  %679 = vmatprep.subr.mxu0 0.0
  %680 = vmatpush2.msra.mxu0 0.0
  %681 = vmatprep.subr.mxu0 0.0
  %682 = vmatpush2.msra.mxu0 0.0
  %683 = vmatprep.subr.mxu0 0.0
  %684 = vmatpush2.msra.mxu0 0.0
  %685 = vmatprep.subr.mxu0 0.0
  %686 = vmatpush2.msra.mxu0 0.0
  %687 = vmatprep.subr.mxu0 0.0
  %688 = vmatpush2.msra.mxu0 0.0
  %689 = vmatprep.subr.mxu0 0.0
  %690 = vmatpush2.msra.mxu0 0.0
  %691 = vmatprep.subr.mxu0 0.0
  %692 = vmatpush2.msra.mxu0 0.0
  %693 = vmatprep.subr.mxu0 0.0
  %694 = vmatpush2.msra.mxu0 0.0
  %695 = vmatprep.subr.mxu0 0.0
  %696 = vmatpush2.msra.mxu0 0.0
  %697 = vmatprep.subr.mxu0 0.0
  %698 = vmatpush2.msra.mxu0 0.0
  %699 = vmatprep.subr.mxu0 0.0
  %700 = vmatpush2.msra.mxu0 0.0
  %701 = vmatprep.subr.mxu0 0.0
  %702 = vmatpush2.msra.mxu0 0.0
  %703 = vmatprep.subr.mxu0 0.0
  %704 = vmatpush2.msra.mxu0 0.0
  %705 = vmatprep.subr.mxu0 0.0
  %706 = vmatpush2.msra.mxu0 0.0
  %707 = vmatprep.subr.mxu0 0.0
  %708 = vmatpush2.msra.mxu0 0.0
  %709 = vmatprep.mubr.f32.mxu0 0.0
  %710 = vmatmul.mubr.f32.gmra.mxu0 %v644
  %v711 = vpop.f32.mrf.mxu0
  %v712 = vadd.f32 0.0, %v711
  %v713 = vpop.f32.mrf.mxu0
  %714 = vdwg.mxu0
  %v715 = vadd.f32 %v323, %v712
  %v716 = vtanh.pop %v715
  %717 = vmatprep.subr.mxu0 0.0
  %718 = vmatpush1.msra.mxu0 %v356
  %719 = vmatprep.subr.mxu0 0.0
  %720 = vmatpush1.msra.mxu0 %v355
  %721 = vmatprep.subr.mxu0 0.0
  %722 = vmatpush1.msra.mxu0 %v354
  %723 = vmatprep.subr.mxu0 0.0
  %724 = vmatpush1.msra.mxu0 %v353
  %725 = vmatprep.subr.mxu0 0.0
  %726 = vmatpush1.msra.mxu0 %v352
  %727 = vmatprep.subr.mxu0 0.0
  %728 = vmatpush1.msra.mxu0 %v351
  %729 = vmatprep.subr.mxu0 0.0
  %730 = vmatpush1.msra.mxu0 %v350
  %731 = vmatprep.subr.mxu0 0.0
  %732 = vmatpush1.msra.mxu0 %v349
  %733 = vmatprep.subr.mxu0 0.0
  %734 = vmatpush1.msra.mxu0 %v348
  %735 = vmatprep.subr.mxu0 0.0
  %736 = vmatpush1.msra.mxu0 %v347
  %737 = vmatprep.subr.mxu0 0.0
  %738 = vmatpush1.msra.mxu0 %v346
  %739 = vmatprep.subr.mxu0 0.0
  %740 = vmatpush1.msra.mxu0 %v345
  %741 = vmatprep.subr.mxu0 0.0
  %742 = vmatpush1.msra.mxu0 %v344
  %743 = vmatprep.subr.mxu0 0.0
  %744 = vmatpush1.msra.mxu0 %v343
  %745 = vmatprep.subr.mxu0 0.0
  %746 = vmatpush1.msra.mxu0 %v342
  %747 = vmatprep.subr.mxu0 0.0
  %748 = vmatpush1.msra.mxu0 %v341
  %749 = vmatprep.subr.mxu0 0.0
  %750 = vmatpush2.msra.mxu0 0.0
  %751 = vmatprep.subr.mxu0 0.0
  %752 = vmatpush2.msra.mxu0 0.0
  %753 = vmatprep.subr.mxu0 0.0
  %754 = vmatpush2.msra.mxu0 0.0
  %755 = vmatprep.subr.mxu0 0.0
  %756 = vmatpush2.msra.mxu0 0.0
  %757 = vmatprep.subr.mxu0 0.0
  %758 = vmatpush2.msra.mxu0 0.0
  %759 = vmatprep.subr.mxu0 0.0
  %760 = vmatpush2.msra.mxu0 0.0
  %761 = vmatprep.subr.mxu0 0.0
  %762 = vmatpush2.msra.mxu0 0.0
  %763 = vmatprep.subr.mxu0 0.0
  %764 = vmatpush2.msra.mxu0 0.0
  %765 = vmatprep.subr.mxu0 0.0
  %766 = vmatpush2.msra.mxu0 0.0
  %767 = vmatprep.subr.mxu0 0.0
  %768 = vmatpush2.msra.mxu0 0.0
  %769 = vmatprep.subr.mxu0 0.0
  %770 = vmatpush2.msra.mxu0 0.0
  %771 = vmatprep.subr.mxu0 0.0
  %772 = vmatpush2.msra.mxu0 0.0
  %773 = vmatprep.subr.mxu0 0.0
  %774 = vmatpush2.msra.mxu0 0.0
  %775 = vmatprep.subr.mxu0 0.0
  %776 = vmatpush2.msra.mxu0 0.0
  %777 = vmatprep.subr.mxu0 0.0
  %778 = vmatpush2.msra.mxu0 0.0
  %779 = vmatprep.subr.mxu0 0.0
  %780 = vmatpush2.msra.mxu0 0.0
  %781 = vmatprep.mubr.f32.mxu0 0.0
  %782 = vmatmul.mubr.f32.gmra.mxu0 %v716
  %v783 = vpop.f32.mrf.mxu0
  %v784 = vadd.f32 0.0, %v783
  %v785 = vpop.f32.mrf.mxu0
  %786 = vdwg.mxu0
  %v787 = vadd.f32 %v328, %v784
  %v788 = vtanh.pop %v787
  %789 = vmatprep.subr.mxu0 0.0
  %790 = vmatpush1.msra.mxu0 %v356
  %791 = vmatprep.subr.mxu0 0.0
  %792 = vmatpush1.msra.mxu0 %v355
  %793 = vmatprep.subr.mxu0 0.0
  %794 = vmatpush1.msra.mxu0 %v354
  %795 = vmatprep.subr.mxu0 0.0
  %796 = vmatpush1.msra.mxu0 %v353
  %797 = vmatprep.subr.mxu0 0.0
  %798 = vmatpush1.msra.mxu0 %v352
  %799 = vmatprep.subr.mxu0 0.0
  %800 = vmatpush1.msra.mxu0 %v351
  %801 = vmatprep.subr.mxu0 0.0
  %802 = vmatpush1.msra.mxu0 %v350
  %803 = vmatprep.subr.mxu0 0.0
  %804 = vmatpush1.msra.mxu0 %v349
  %805 = vmatprep.subr.mxu0 0.0
  %806 = vmatpush1.msra.mxu0 %v348
  %807 = vmatprep.subr.mxu0 0.0
  %808 = vmatpush1.msra.mxu0 %v347
  %809 = vmatprep.subr.mxu0 0.0
  %810 = vmatpush1.msra.mxu0 %v346
  %811 = vmatprep.subr.mxu0 0.0
  %812 = vmatpush1.msra.mxu0 %v345
  %813 = vmatprep.subr.mxu0 0.0
  %814 = vmatpush1.msra.mxu0 %v344
  %815 = vmatprep.subr.mxu0 0.0
  %816 = vmatpush1.msra.mxu0 %v343
  %817 = vmatprep.subr.mxu0 0.0
  %818 = vmatpush1.msra.mxu0 %v342
  %819 = vmatprep.subr.mxu0 0.0
  %820 = vmatpush1.msra.mxu0 %v341
  %821 = vmatprep.subr.mxu0 0.0
  %822 = vmatpush2.msra.mxu0 0.0
  %823 = vmatprep.subr.mxu0 0.0
  %824 = vmatpush2.msra.mxu0 0.0
  %825 = vmatprep.subr.mxu0 0.0
  %826 = vmatpush2.msra.mxu0 0.0
  %827 = vmatprep.subr.mxu0 0.0
  %828 = vmatpush2.msra.mxu0 0.0
  %829 = vmatprep.subr.mxu0 0.0
  %830 = vmatpush2.msra.mxu0 0.0
  %831 = vmatprep.subr.mxu0 0.0
  %832 = vmatpush2.msra.mxu0 0.0
  %833 = vmatprep.subr.mxu0 0.0
  %834 = vmatpush2.msra.mxu0 0.0
  %835 = vmatprep.subr.mxu0 0.0
  %836 = vmatpush2.msra.mxu0 0.0
  %837 = vmatprep.subr.mxu0 0.0
  %838 = vmatpush2.msra.mxu0 0.0
  %839 = vmatprep.subr.mxu0 0.0
  %840 = vmatpush2.msra.mxu0 0.0
  %841 = vmatprep.subr.mxu0 0.0
  %842 = vmatpush2.msra.mxu0 0.0
  %843 = vmatprep.subr.mxu0 0.0
  %844 = vmatpush2.msra.mxu0 0.0
  %845 = vmatprep.subr.mxu0 0.0
  %846 = vmatpush2.msra.mxu0 0.0
  %847 = vmatprep.subr.mxu0 0.0
  %848 = vmatpush2.msra.mxu0 0.0
  %849 = vmatprep.subr.mxu0 0.0
  %850 = vmatpush2.msra.mxu0 0.0
  %851 = vmatprep.subr.mxu0 0.0
  %852 = vmatpush2.msra.mxu0 0.0
  %853 = vmatprep.mubr.f32.mxu0 0.0
  %854 = vmatmul.mubr.f32.gmra.mxu0 %v788
  %v855 = vpop.f32.mrf.mxu0
  %v856 = vadd.f32 0.0, %v855
  %v857 = vpop.f32.mrf.mxu0
  %858 = vdwg.mxu0
  %v859 = vadd.f32 %v333, %v856
  %v860 = vtanh.pop %v859
  %861 = vmatprep.subr.mxu0 0.0
  %862 = vmatpush1.msra.mxu0 %v356
  %863 = vmatprep.subr.mxu0 0.0
  %864 = vmatpush1.msra.mxu0 %v355
  %865 = vmatprep.subr.mxu0 0.0
  %866 = vmatpush1.msra.mxu0 %v354
  %867 = vmatprep.subr.mxu0 0.0
  %868 = vmatpush1.msra.mxu0 %v353
  %869 = vmatprep.subr.mxu0 0.0
  %870 = vmatpush1.msra.mxu0 %v352
  %871 = vmatprep.subr.mxu0 0.0
  %872 = vmatpush1.msra.mxu0 %v351
  %873 = vmatprep.subr.mxu0 0.0
  %874 = vmatpush1.msra.mxu0 %v350
  %875 = vmatprep.subr.mxu0 0.0
  %876 = vmatpush1.msra.mxu0 %v349
  %877 = vmatprep.subr.mxu0 0.0
  %878 = vmatpush1.msra.mxu0 %v348
  %879 = vmatprep.subr.mxu0 0.0
  %880 = vmatpush1.msra.mxu0 %v347
  %881 = vmatprep.subr.mxu0 0.0
  %882 = vmatpush1.msra.mxu0 %v346
  %883 = vmatprep.subr.mxu0 0.0
  %884 = vmatpush1.msra.mxu0 %v345
  %885 = vmatprep.subr.mxu0 0.0
  %886 = vmatpush1.msra.mxu0 %v344
  %887 = vmatprep.subr.mxu0 0.0
  %888 = vmatpush1.msra.mxu0 %v343
  %889 = vmatprep.subr.mxu0 0.0
  %890 = vmatpush1.msra.mxu0 %v342
  %891 = vmatprep.subr.mxu0 0.0
  %892 = vmatpush1.msra.mxu0 %v341
  %893 = vmatprep.subr.mxu0 0.0
  %894 = vmatpush2.msra.mxu0 0.0
  %895 = vmatprep.subr.mxu0 0.0
  %896 = vmatpush2.msra.mxu0 0.0
  %897 = vmatprep.subr.mxu0 0.0
  %898 = vmatpush2.msra.mxu0 0.0
  %899 = vmatprep.subr.mxu0 0.0
  %900 = vmatpush2.msra.mxu0 0.0
  %901 = vmatprep.subr.mxu0 0.0
  %902 = vmatpush2.msra.mxu0 0.0
  %903 = vmatprep.subr.mxu0 0.0
  %904 = vmatpush2.msra.mxu0 0.0
  %905 = vmatprep.subr.mxu0 0.0
  %906 = vmatpush2.msra.mxu0 0.0
  %907 = vmatprep.subr.mxu0 0.0
  %908 = vmatpush2.msra.mxu0 0.0
  %909 = vmatprep.subr.mxu0 0.0
  %910 = vmatpush2.msra.mxu0 0.0
  %911 = vmatprep.subr.mxu0 0.0
  %912 = vmatpush2.msra.mxu0 0.0
  %913 = vmatprep.subr.mxu0 0.0
  %914 = vmatpush2.msra.mxu0 0.0
  %915 = vmatprep.subr.mxu0 0.0
  %916 = vmatpush2.msra.mxu0 0.0
  %917 = vmatprep.subr.mxu0 0.0
  %918 = vmatpush2.msra.mxu0 0.0
  %919 = vmatprep.subr.mxu0 0.0
  %920 = vmatpush2.msra.mxu0 0.0
  %921 = vmatprep.subr.mxu0 0.0
  %922 = vmatpush2.msra.mxu0 0.0
  %923 = vmatprep.subr.mxu0 0.0
  %924 = vmatpush2.msra.mxu0 0.0
  %925 = vmatprep.mubr.f32.mxu0 0.0
  %926 = vmatmul.mubr.f32.gmra.mxu0 %v860
  %v927 = vpop.f32.mrf.mxu0
  %v928 = vadd.f32 0.0, %v927
  %v929 = vpop.f32.mrf.mxu0
  %930 = vdwg.mxu0
  %v931 = vadd.f32 %v338, %v928
  %v932 = vtanh.pop %v931
  %v933 = vld [vmem:[%s5] sm:$0xff]
  %v934 = vld [vmem:[%s5 + $0x8] sm:$0xff]
  %v935 = vld [vmem:[%s5 + $0x10] sm:$0xff]
  %v936 = vld [vmem:[%s5 + $0x18] sm:$0xff]
  %v937 = vld [vmem:[%s5 + $0x20] sm:$0xff]
  %v938 = vld [vmem:[%s5 + $0x28] sm:$0xff]
  %v939 = vld [vmem:[%s5 + $0x30] sm:$0xff]
  %v940 = vld [vmem:[%s5 + $0x38] sm:$0xff]
  %v941 = vld [vmem:[%s5 + $0x40] sm:$0xff]
  %v942 = vld [vmem:[%s5 + $0x48] sm:$0xff]
  %v943 = vld [vmem:[%s5 + $0x50] sm:$0xff]
  %v944 = vld [vmem:[%s5 + $0x58] sm:$0xff]
  %v945 = vld [vmem:[%s5 + $0x60] sm:$0xff]
  %v946 = vld [vmem:[%s5 + $0x68] sm:$0xff]
  %v947 = vld [vmem:[%s5 + $0x70] sm:$0xff]
  %v948 = vld [vmem:[%s5 + $0x78] sm:$0xff]
  %v949 = vld [vmem:[%s5 + $0x80] sm:$0xff]
  %v950 = vld [vmem:[%s5 + $0x88] sm:$0xff]
  %v951 = vld [vmem:[%s5 + $0x90] sm:$0xff]
  %v952 = vld [vmem:[%s5 + $0x98] sm:$0xff]
  %v953 = vld [vmem:[%s5 + $0xa0] sm:$0xff]
  %v954 = vld [vmem:[%s5 + $0xa8] sm:$0xff]
  %v955 = vld [vmem:[%s5 + $0xb0] sm:$0xff]
  %v956 = vld [vmem:[%s5 + $0xb8] sm:$0xff]
  %v957 = vld [vmem:[%s5 + $0xc0] sm:$0xff]
  %v958 = vld [vmem:[%s5 + $0xc8] sm:$0xff]
  %v959 = vld [vmem:[%s5 + $0xd0] sm:$0xff]
  %v960 = vld [vmem:[%s5 + $0xd8] sm:$0xff]
  %v961 = vld [vmem:[%s5 + $0xe0] sm:$0xff]
  %v962 = vld [vmem:[%s5 + $0xe8] sm:$0xff]
  %v963 = vld [vmem:[%s5 + $0xf0] sm:$0xff]
  %v964 = vld [vmem:[%s5 + $0xf8] sm:$0xff]
  %v965 = vld [vmem:[%s6] sm:$0x3]
  %v967 = vlaneseq
  %v968 = vshrl.u32 %v967, 7
  %v969 = vsub.s32 0, %v968
  %v970 = vrot.slane %v965, %v969
  %v971 = vlaneseq
  %v972 = vshrl.u32 %v971, 7
  %v973 = vsub.s32 1, %v972
  %v974 = vrot.slane %v965, %v973
  %977 = vmatprep.subr.mxu0 %v964
  %978 = vmatpush1.msra.mxu0 %v963
  %979 = vmatprep.subr.mxu0 %v962
  %980 = vmatpush1.msra.mxu0 %v961
  %981 = vmatprep.subr.mxu0 %v960
  %982 = vmatpush1.msra.mxu0 %v959
  %983 = vmatprep.subr.mxu0 %v958
  %984 = vmatpush1.msra.mxu0 %v957
  %985 = vmatprep.subr.mxu0 %v956
  %986 = vmatpush1.msra.mxu0 %v955
  %987 = vmatprep.subr.mxu0 %v954
  %988 = vmatpush1.msra.mxu0 %v953
  %989 = vmatprep.subr.mxu0 %v952
  %990 = vmatpush1.msra.mxu0 %v951
  %991 = vmatprep.subr.mxu0 %v950
  %992 = vmatpush1.msra.mxu0 %v949
  %993 = vmatprep.subr.mxu0 %v948
  %994 = vmatpush1.msra.mxu0 %v947
  %995 = vmatprep.subr.mxu0 %v946
  %996 = vmatpush1.msra.mxu0 %v945
  %997 = vmatprep.subr.mxu0 %v944
  %998 = vmatpush1.msra.mxu0 %v943
  %999 = vmatprep.subr.mxu0 %v942
  %1000 = vmatpush1.msra.mxu0 %v941
  %1001 = vmatprep.subr.mxu0 %v940
  %1002 = vmatpush1.msra.mxu0 %v939
  %1003 = vmatprep.subr.mxu0 %v938
  %1004 = vmatpush1.msra.mxu0 %v937
  %1005 = vmatprep.subr.mxu0 %v936
  %1006 = vmatpush1.msra.mxu0 %v935
  %1007 = vmatprep.subr.mxu0 %v934
  %1008 = vmatpush1.msra.mxu0 %v933
  %1009 = vmatprep.subr.mxu0 0.0
  %1010 = vmatpush2.msra.mxu0 0.0
  %1011 = vmatprep.subr.mxu0 0.0
  %1012 = vmatpush2.msra.mxu0 0.0
  %1013 = vmatprep.subr.mxu0 0.0
  %1014 = vmatpush2.msra.mxu0 0.0
  %1015 = vmatprep.subr.mxu0 0.0
  %1016 = vmatpush2.msra.mxu0 0.0
  %1017 = vmatprep.subr.mxu0 0.0
  %1018 = vmatpush2.msra.mxu0 0.0
  %1019 = vmatprep.subr.mxu0 0.0
  %1020 = vmatpush2.msra.mxu0 0.0
  %1021 = vmatprep.subr.mxu0 0.0
  %1022 = vmatpush2.msra.mxu0 0.0
  %1023 = vmatprep.subr.mxu0 0.0
  %1024 = vmatpush2.msra.mxu0 0.0
  %1025 = vmatprep.subr.mxu0 0.0
  %1026 = vmatpush2.msra.mxu0 0.0
  %1027 = vmatprep.subr.mxu0 0.0
  %1028 = vmatpush2.msra.mxu0 0.0
  %1029 = vmatprep.subr.mxu0 0.0
  %1030 = vmatpush2.msra.mxu0 0.0
  %1031 = vmatprep.subr.mxu0 0.0
  %1032 = vmatpush2.msra.mxu0 0.0
  %1033 = vmatprep.subr.mxu0 0.0
  %1034 = vmatpush2.msra.mxu0 0.0
  %1035 = vmatprep.subr.mxu0 0.0
  %1036 = vmatpush2.msra.mxu0 0.0
  %1037 = vmatprep.subr.mxu0 0.0
  %1038 = vmatpush2.msra.mxu0 0.0
  %1039 = vmatprep.subr.mxu0 0.0
  %1040 = vmatpush2.msra.mxu0 0.0
  %1041 = vmatprep.mubr.f32.mxu0 0.0
  %1042 = vmatmul.mubr.f32.gmra.mxu0 %v932
  %v1043 = vpop.f32.mrf.mxu0
  %v1044 = vadd.f32 %v970, %v1043
  %v1045 = vpop.f32.mrf.mxu0
  %v1046 = vadd.f32 %v974, %v1045
  %1047 = vdwg.mxu0
  %v1048 = vmax.f32 %v1044, 0.0
  %v1049 = vmax.f32 %v1046, 0.0
  %v1050 = vld [vmem:[%s7] sm:$0x3]
  %v1052 = vlaneseq
  %v1053 = vshrl.u32 %v1052, 7
  %v1054 = vsub.s32 0, %v1053
  %v1055 = vrot.slane %v1050, %v1054
  %v1056 = vlaneseq
  %v1057 = vshrl.u32 %v1056, 7
  %v1058 = vsub.s32 1, %v1057
  %v1059 = vrot.slane %v1050, %v1058
  %v1062 = vmul.f32 %v1048, %v1055
  %v1063 = vmul.f32 %v1049, %v1059
  %v1064 = vadd.f32 %v1062, %v1063
  %1065 = vadd.xlane.f32.xlu0 %v1064
  %v1066 = vpop.xlane.xlu0 %1065
  %v1067 = vld [vmem:[#allocation2] sm:$0x1]
  %v1069 = vlaneseq
  %v1070 = vshrl.u32 %v1069, 7
  %v1071 = vsub.s32 0, %v1070
  %v1072 = vrot.slane %v1067, %v1071
  %v1074 = vadd.f32 %v1066, %v1072
  %1076 = vset.pattern.permute.xlu0 0
  %1077 = vperm.xlu0 %1076, %v1074
  %v1078 = vpop.permute.xlu0 %1077
  %1080 = vst [vmem:[%s9] sm:$0xff] %v1078
  // Predicated region
  $region38: #{recurrent_model_forward.1} parent=0 // pred_check
    _
  $region39: #{recurrent_model_forward.1} parent=0 // pred_check_branch
    %1082 = sbr.rel (0) target = $region41
  $region40: #{recurrent_model_forward.1} parent=0 // pred_region
    _
  $region41: #{recurrent_model_forward.1} parent=0 // pred_fallthru
    _
  // Predicated region
  $region42: #{recurrent_model_forward.1} parent=0 // pred_check
    _
  $region43: #{recurrent_model_forward.1} parent=0 // pred_check_branch
    %1084 = sbr.rel (0) target = $region45
  $region44: #{recurrent_model_forward.1} parent=0 // pred_region
    _
  $region45: #{recurrent_model_forward.1} parent=0 // pred_fallthru
    _

</llo_original>
